<compile_context>
chip_gen: v7x
topology: tpu7x:2x2x1
jax: 0.10.0
libtpu: 0.0.40
codegen_flags: <defaults>
</compile_context>

<pallas_src>
import functools

import jax
import jax.numpy as jnp
from jax.experimental import pallas as pl
from jax.experimental.pallas import tpu as pltpu


def _sdn_pool_kernel(alpha_ref, x_ref, out_ref, *, inv_win):
    # alpha_ref: SMEM (1,) f32 scalar
    # x_ref:     VMEM (tb, kh*kw, P*P, tc)   -- (P*P, tc) is the (sublane, lane) tile
    # out_ref:   VMEM (tb, P*P, tc)          -- lane-dense store
    alpha = alpha_ref[0]
    x = x_ref[...]                                            # (tb, KK, PP, tc)
    # Window reduction along a major axis => pure VPU, vectorized over channels.
    mx = jnp.max(x, axis=1).astype(jnp.float32)               # (tb, PP, tc)
    av = jnp.sum(x, axis=1, dtype=jnp.float32) * inv_win      # (tb, PP, tc)
    # alpha*max + (1-alpha)*avg  ==  avg + alpha*(max - avg)
    out_ref[...] = (av + alpha * (mx - av)).astype(out_ref.dtype)


def _pick_tiles(B, C, KK, PP, itemsize, target_block_bytes):
    """Pick (batch_tile, channel_tile): multi-MiB blocks that still fit VMEM."""
    bytes_per_b_per_c = KK * PP * itemsize                    # == H * W * itemsize
    # Channel tile: full C unless one batch element's channels already blow the
    # target; then fall back to a multiple-of-128 divisor of C.
    tc = C
    if C > 128 and C * bytes_per_b_per_c > target_block_bytes:
        for n in range(C // 128, 0, -1):
            cand = n * 128
            if C % cand == 0 and cand * bytes_per_b_per_c <= target_block_bytes:
                tc = cand
                break
        else:
            if C % 128 == 0:
                tc = 128
    # Batch tile: pack batches up to the target (amortize per-grid-step overhead),
    # must divide B so every block is full (no padding into max/avg).
    per_b = tc * bytes_per_b_per_c
    tb = max(1, min(B, target_block_bytes // max(per_b, 1)))
    while B % tb:
        tb -= 1
    return tb, tc


def sdn_pool_v2(x, alpha, pool_size=4, *,
                target_block_bytes=8 * 1024 * 1024,
                vmem_limit_bytes=32 * 1024 * 1024):
    """x: (B, C, H, W), alpha: (1,) f32 -> (B, C*pool_size*pool_size).

    Matches PyTorch SDNPool_v2.forward: alpha*maxpool(x) + (1-alpha)*avgpool(x),
    flattened as (B, C, P, P).view(B, -1).
    """
    B, C, H, W = x.shape
    P = pool_size
    assert H % P == 0 and W % P == 0, "adaptive pool: divisible case only"
    kh, kw = H // P, W // P
    KK, PP = kh * kw, P * P

    alpha = jnp.asarray(alpha, jnp.float32).reshape(1)

    # Layout plumbing (wrapper side): (B, C, H, W) -> (B, kh*kw, P*P, C).
    # In a real NHWC pipeline this transpose disappears; here it keeps the
    # PyTorch NCHW interface while giving the kernel a TPU-friendly layout.
    xt = x.reshape(B, C, P, kh, P, kw)                 # (b, c, ph, i, pw, j)
    xt = jnp.transpose(xt, (0, 3, 5, 2, 4, 1))         # (b, i, j, ph, pw, c)
    xt = xt.reshape(B, KK, PP, C)                      # KK = i*kw+j, PP = ph*P+pw

    tb, tc = _pick_tiles(B, C, KK, PP, jnp.dtype(x.dtype).itemsize,
                         target_block_bytes)

    kernel = functools.partial(_sdn_pool_kernel, inv_win=1.0 / float(KK))

    out = pl.pallas_call(
        kernel,
        out_shape=jax.ShapeDtypeStruct((B, PP, C), x.dtype),
        grid=(B // tb, C // tc),
        in_specs=[
            pl.BlockSpec(memory_space=pltpu.MemorySpace.SMEM),           # alpha
            pl.BlockSpec((tb, KK, PP, tc), lambda b, c: (b, 0, 0, c)),   # input tile
        ],
        out_specs=pl.BlockSpec((tb, PP, tc), lambda b, c: (b, 0, c)),    # lane-dense
        compiler_params=pltpu.CompilerParams(
            dimension_semantics=("parallel", "parallel"),
            vmem_limit_bytes=vmem_limit_bytes,
        ),
    )(alpha, xt)

    # (B, P*P, C) -> (B, C, P*P) -> (B, C*P*P): matches torch pooled.view(B, -1).
    return jnp.transpose(out, (0, 2, 1)).reshape(B, C * PP)


def _reference(x, alpha, pool_size=4):
    B, C, H, W = x.shape
    kh, kw = H // pool_size, W // pool_size
    xr = x.reshape(B, C, pool_size, kh, pool_size, kw)
    mx = xr.max(axis=(3, 5))
    av = xr.mean(axis=(3, 5))
    mixed = alpha[0] * mx + (1.0 - alpha[0]) * av
    return mixed.reshape(B, -1)


if __name__ == "__main__":
    key = jax.random.PRNGKey(0)
    kx, ka = jax.random.split(key)

    B, C, H, W = 2, 4, 16, 16
    pool_size = 4

    x = jax.random.normal(kx, (B, C, H, W), dtype=jnp.float32)
    # deterministic stand-in for nn.Parameter(torch.rand(1))
    alpha = jax.random.uniform(ka, (1,), dtype=jnp.float32)

    out = sdn_pool_v2(x, alpha, pool_size=pool_size)
    out = jax.block_until_ready(out)

    ref = _reference(x, alpha, pool_size=pool_size)
    assert out.shape == (B, C * pool_size * pool_size), out.shape
    assert jnp.allclose(out, ref, atol=1e-5, rtol=1e-5), "mismatch vs reference"

    print("KERNEL_OK")
</pallas_src>

<mosaic_0001>
module attributes {stable_mosaic.version = 11 : i64} {
  func.func @_sdn_pool_kernel(%arg0: i32, %arg1: i32, %arg2: memref<1xf32, #tpu.memory_space<smem>>, %arg3: memref<2x16x16x4xf32, #tpu.memory_space<vmem>>, %arg4: memref<2x16x4xf32, #tpu.memory_space<vmem>>) attributes {dimension_semantics = [#tpu.dimension_semantics<parallel>, #tpu.dimension_semantics<parallel>], iteration_bounds = array<i64: 1, 1>, scalar_prefetch = 0 : i64, scratch_operands = 0 : i64, tpu.core_type = #tpu.core_type<tc>, window_params = [{transform_indices = @transform_0, window_bounds = array<i64: 1>}, {transform_indices = @transform_1, window_bounds = array<i64: 2, 16, 16, 4>}, {transform_indices = @transform_2, window_bounds = array<i64: 2, 16, 4>}]} {
    %c0 = arith.constant 0 : index
    %0 = memref.load %arg2[%c0] : memref<1xf32, #tpu.memory_space<smem>>
    %c0_0 = arith.constant 0 : index
    %c0_1 = arith.constant 0 : index
    %c0_2 = arith.constant 0 : index
    %c0_3 = arith.constant 0 : index
    %1 = vector.load %arg3[%c0_0, %c0_1, %c0_2, %c0_3] : memref<2x16x16x4xf32, #tpu.memory_space<vmem>>, vector<2x16x16x4xf32>
    %cst = arith.constant dense<0xFF800000> : vector<2x16x4xf32>
    %2 = vector.multi_reduction <maximumf>, %1, %cst [1] : vector<2x16x16x4xf32> to vector<2x16x4xf32>
    %cst_4 = arith.constant dense<0.000000e+00> : vector<2x16x4xf32>
    %3 = vector.multi_reduction <add>, %1, %cst_4 [1] : vector<2x16x16x4xf32> to vector<2x16x4xf32>
    %cst_5 = arith.constant 6.250000e-02 : f32
    %4 = vector.broadcast %cst_5 : f32 to vector<2x16x4xf32>
    %5 = arith.mulf %3, %4 : vector<2x16x4xf32>
    %6 = arith.subf %2, %5 : vector<2x16x4xf32>
    %7 = vector.broadcast %0 : f32 to vector<2x16x4xf32>
    %8 = arith.mulf %7, %6 : vector<2x16x4xf32>
    %9 = arith.addf %5, %8 : vector<2x16x4xf32>
    %c0_6 = arith.constant 0 : index
    %c0_7 = arith.constant 0 : index
    %c0_8 = arith.constant 0 : index
    %10 = vector.load %arg4[%c0_6, %c0_7, %c0_8] : memref<2x16x4xf32, #tpu.memory_space<vmem>>, vector<2x16x4xf32>
    tpu.vector_store %arg4[%c0_6, %c0_7, %c0_8], %9 {strides = array<i32>} : memref<2x16x4xf32, #tpu.memory_space<vmem>>, vector<2x16x4xf32>,
    return
  }
  func.func @transform_0(%arg0: i32, %arg1: i32) -> i32 {
    %c0_i32 = arith.constant 0 : i32
    %c0_i32_0 = arith.constant 0 : i32
    return %c0_i32 : i32
  }
  func.func @transform_1(%arg0: i32, %arg1: i32) -> (i32, i32, i32, i32) {
    %c0_i32 = arith.constant 0 : i32
    %c0_i32_0 = arith.constant 0 : i32
    %c0_i32_1 = arith.constant 0 : i32
    return %arg0, %c0_i32, %c0_i32_0, %arg1 : i32, i32, i32, i32
  }
  func.func @transform_2(%arg0: i32, %arg1: i32) -> (i32, i32, i32) {
    %c0_i32 = arith.constant 0 : i32
    %c0_i32_0 = arith.constant 0 : i32
    return %arg0, %c0_i32, %arg1 : i32, i32, i32
  }
}

</mosaic_0001>

<llo_original>
// kernel: tpu_custom_call.1
$region0: #{tpu_custom_call.1}
  #allocation0 [shape = 'u32[]', space=smem, size = 0x4, offset = 0x4, fixed_abs, tag = 'smem constant byte address 0x4 - core index']
  #allocation1 [shape = 'u32[144,128]{1,0:T(1,128)}', space=vmem, size = 0x12000, scoped, tag = 'internal scratch']
  #allocation2 [shape = 'f32[1]{0:T(128)S(6)}', space=smem, size = 0x200, scoped, tag = 'scoped memory for tpu_custom_call.1']
  %s0 = inlined_call_operand.<no memory space> [shape: f32[1], index: 0, kind: input, shape index: {}]
  %s1 = inlined_call_operand.vmem [shape: f32[2,16,16,4], index: 1, kind: input, shape index: {}]
  %s2 = inlined_call_operand.vmem [shape: f32[2,16,4], index: 2, kind: output, shape index: {}]
  %s3 = sld [smem:[#allocation0]]
  $region18: #{tpu_custom_call.1} parent=0
    _
  %s5 = ssub.s32 1, %s3
  %s6 = scalar_select 0, %s5, %s3
  %7 = sst [smem:[#allocation2]] %s0
  // Predicated region
  $region2: #{tpu_custom_call.1} parent=0 // pred_check
    _
  $region3: #{tpu_custom_call.1} parent=0 // pred_check_branch
    %9 = sbr.rel (0) target = $region5
  $region4: #{tpu_custom_call.1} parent=0 // pred_region
    _
  $region5: #{tpu_custom_call.1} parent=0 // pred_fallthru
    _
  // Predicated region
  $region6: #{tpu_custom_call.1} parent=0 // pred_check
    _
  $region7: #{tpu_custom_call.1} parent=0 // pred_check_branch
    %11 = sbr.rel (0) target = $region9
  $region8: #{tpu_custom_call.1} parent=0 // pred_region
    _
  $region9: #{tpu_custom_call.1} parent=0 // pred_fallthru
    _
  %s12 = sld [smem:[#allocation2]]
  %v13 = vld [vmem:[%s1] sm:$0xff]
  %v14 = vld [vmem:[%s1 + $0x8] sm:$0xff]
  %v15 = vld [vmem:[%s1 + $0x10] sm:$0xff]
  %v16 = vld [vmem:[%s1 + $0x18] sm:$0xff]
  %v17 = vld [vmem:[%s1 + $0x20] sm:$0xff]
  %v18 = vld [vmem:[%s1 + $0x28] sm:$0xff]
  %v19 = vld [vmem:[%s1 + $0x30] sm:$0xff]
  %v20 = vld [vmem:[%s1 + $0x38] sm:$0xff]
  %v21 = vld [vmem:[%s1 + $0x40] sm:$0xff]
  %v22 = vld [vmem:[%s1 + $0x48] sm:$0xff]
  %v23 = vld [vmem:[%s1 + $0x50] sm:$0xff]
  %v24 = vld [vmem:[%s1 + $0x58] sm:$0xff]
  %v25 = vld [vmem:[%s1 + $0x60] sm:$0xff]
  %v26 = vld [vmem:[%s1 + $0x68] sm:$0xff]
  %v27 = vld [vmem:[%s1 + $0x70] sm:$0xff]
  %v28 = vld [vmem:[%s1 + $0x78] sm:$0xff]
  %v29 = vld [vmem:[%s1 + $0x80] sm:$0xff]
  %v30 = vld [vmem:[%s1 + $0x88] sm:$0xff]
  %v31 = vld [vmem:[%s1 + $0x90] sm:$0xff]
  %v32 = vld [vmem:[%s1 + $0x98] sm:$0xff]
  %v33 = vld [vmem:[%s1 + $0xa0] sm:$0xff]
  %v34 = vld [vmem:[%s1 + $0xa8] sm:$0xff]
  %v35 = vld [vmem:[%s1 + $0xb0] sm:$0xff]
  %v36 = vld [vmem:[%s1 + $0xb8] sm:$0xff]
  %v37 = vld [vmem:[%s1 + $0xc0] sm:$0xff]
  %v38 = vld [vmem:[%s1 + $0xc8] sm:$0xff]
  %v39 = vld [vmem:[%s1 + $0xd0] sm:$0xff]
  %v40 = vld [vmem:[%s1 + $0xd8] sm:$0xff]
  %v41 = vld [vmem:[%s1 + $0xe0] sm:$0xff]
  %v42 = vld [vmem:[%s1 + $0xe8] sm:$0xff]
  %v43 = vld [vmem:[%s1 + $0xf0] sm:$0xff]
  %v44 = vld [vmem:[%s1 + $0xf8] sm:$0xff]
  %v45 = vld [vmem:[%s1 + $0x100] sm:$0xff]
  %v46 = vld [vmem:[%s1 + $0x108] sm:$0xff]
  %v47 = vld [vmem:[%s1 + $0x110] sm:$0xff]
  %v48 = vld [vmem:[%s1 + $0x118] sm:$0xff]
  %v49 = vld [vmem:[%s1 + $0x120] sm:$0xff]
  %v50 = vld [vmem:[%s1 + $0x128] sm:$0xff]
  %v51 = vld [vmem:[%s1 + $0x130] sm:$0xff]
  %v52 = vld [vmem:[%s1 + $0x138] sm:$0xff]
  %v53 = vld [vmem:[%s1 + $0x140] sm:$0xff]
  %v54 = vld [vmem:[%s1 + $0x148] sm:$0xff]
  %v55 = vld [vmem:[%s1 + $0x150] sm:$0xff]
  %v56 = vld [vmem:[%s1 + $0x158] sm:$0xff]
  %v57 = vld [vmem:[%s1 + $0x160] sm:$0xff]
  %v58 = vld [vmem:[%s1 + $0x168] sm:$0xff]
  %v59 = vld [vmem:[%s1 + $0x170] sm:$0xff]
  %v60 = vld [vmem:[%s1 + $0x178] sm:$0xff]
  %v61 = vld [vmem:[%s1 + $0x180] sm:$0xff]
  %v62 = vld [vmem:[%s1 + $0x188] sm:$0xff]
  %v63 = vld [vmem:[%s1 + $0x190] sm:$0xff]
  %v64 = vld [vmem:[%s1 + $0x198] sm:$0xff]
  %v65 = vld [vmem:[%s1 + $0x1a0] sm:$0xff]
  %v66 = vld [vmem:[%s1 + $0x1a8] sm:$0xff]
  %v67 = vld [vmem:[%s1 + $0x1b0] sm:$0xff]
  %v68 = vld [vmem:[%s1 + $0x1b8] sm:$0xff]
  %v69 = vld [vmem:[%s1 + $0x1c0] sm:$0xff]
  %v70 = vld [vmem:[%s1 + $0x1c8] sm:$0xff]
  %v71 = vld [vmem:[%s1 + $0x1d0] sm:$0xff]
  %v72 = vld [vmem:[%s1 + $0x1d8] sm:$0xff]
  %v73 = vld [vmem:[%s1 + $0x1e0] sm:$0xff]
  %v74 = vld [vmem:[%s1 + $0x1e8] sm:$0xff]
  %v75 = vld [vmem:[%s1 + $0x1f0] sm:$0xff]
  %v76 = vld [vmem:[%s1 + $0x1f8] sm:$0xff]
  %vm77 = vcmask 31744
  %v78 = vsel %vm77, %v13, -inf
  %v79 = vsel %vm77, %v15, -inf
  %v80 = vmax.f32 %v78, %v79
  %v81 = vsel %vm77, %v17, -inf
  %v82 = vmax.f32 %v80, %v81
  %v83 = vsel %vm77, %v19, -inf
  %v84 = vmax.f32 %v82, %v83
  %v85 = vsel %vm77, %v21, -inf
  %v86 = vmax.f32 %v84, %v85
  %v87 = vsel %vm77, %v23, -inf
  %v88 = vmax.f32 %v86, %v87
  %v89 = vsel %vm77, %v25, -inf
  %v90 = vmax.f32 %v88, %v89
  %v91 = vsel %vm77, %v27, -inf
  %v92 = vmax.f32 %v90, %v91
  %v93 = vsel %vm77, %v29, -inf
  %v94 = vmax.f32 %v92, %v93
  %v95 = vsel %vm77, %v31, -inf
  %v96 = vmax.f32 %v94, %v95
  %v97 = vsel %vm77, %v33, -inf
  %v98 = vmax.f32 %v96, %v97
  %v99 = vsel %vm77, %v35, -inf
  %v100 = vmax.f32 %v98, %v99
  %v101 = vsel %vm77, %v37, -inf
  %v102 = vmax.f32 %v100, %v101
  %v103 = vsel %vm77, %v39, -inf
  %v104 = vmax.f32 %v102, %v103
  %v105 = vsel %vm77, %v41, -inf
  %v106 = vmax.f32 %v104, %v105
  %v107 = vsel %vm77, %v43, -inf
  %v108 = vmax.f32 %v106, %v107
  %v109 = vsel %vm77, %v14, -inf
  %v110 = vsel %vm77, %v16, -inf
  %v111 = vmax.f32 %v109, %v110
  %v112 = vsel %vm77, %v18, -inf
  %v113 = vmax.f32 %v111, %v112
  %v114 = vsel %vm77, %v20, -inf
  %v115 = vmax.f32 %v113, %v114
  %v116 = vsel %vm77, %v22, -inf
  %v117 = vmax.f32 %v115, %v116
  %v118 = vsel %vm77, %v24, -inf
  %v119 = vmax.f32 %v117, %v118
  %v120 = vsel %vm77, %v26, -inf
  %v121 = vmax.f32 %v119, %v120
  %v122 = vsel %vm77, %v28, -inf
  %v123 = vmax.f32 %v121, %v122
  %v124 = vsel %vm77, %v30, -inf
  %v125 = vmax.f32 %v123, %v124
  %v126 = vsel %vm77, %v32, -inf
  %v127 = vmax.f32 %v125, %v126
  %v128 = vsel %vm77, %v34, -inf
  %v129 = vmax.f32 %v127, %v128
  %v130 = vsel %vm77, %v36, -inf
  %v131 = vmax.f32 %v129, %v130
  %v132 = vsel %vm77, %v38, -inf
  %v133 = vmax.f32 %v131, %v132
  %v134 = vsel %vm77, %v40, -inf
  %v135 = vmax.f32 %v133, %v134
  %v136 = vsel %vm77, %v42, -inf
  %v137 = vmax.f32 %v135, %v136
  %v138 = vsel %vm77, %v44, -inf
  %v139 = vmax.f32 %v137, %v138
  %v140 = vsel %vm77, %v45, -inf
  %v141 = vsel %vm77, %v47, -inf
  %v142 = vmax.f32 %v140, %v141
  %v143 = vsel %vm77, %v49, -inf
  %v144 = vmax.f32 %v142, %v143
  %v145 = vsel %vm77, %v51, -inf
  %v146 = vmax.f32 %v144, %v145
  %v147 = vsel %vm77, %v53, -inf
  %v148 = vmax.f32 %v146, %v147
  %v149 = vsel %vm77, %v55, -inf
  %v150 = vmax.f32 %v148, %v149
  %v151 = vsel %vm77, %v57, -inf
  %v152 = vmax.f32 %v150, %v151
  %v153 = vsel %vm77, %v59, -inf
  %v154 = vmax.f32 %v152, %v153
  %v155 = vsel %vm77, %v61, -inf
  %v156 = vmax.f32 %v154, %v155
  %v157 = vsel %vm77, %v63, -inf
  %v158 = vmax.f32 %v156, %v157
  %v159 = vsel %vm77, %v65, -inf
  %v160 = vmax.f32 %v158, %v159
  %v161 = vsel %vm77, %v67, -inf
  %v162 = vmax.f32 %v160, %v161
  %v163 = vsel %vm77, %v69, -inf
  %v164 = vmax.f32 %v162, %v163
  %v165 = vsel %vm77, %v71, -inf
  %v166 = vmax.f32 %v164, %v165
  %v167 = vsel %vm77, %v73, -inf
  %v168 = vmax.f32 %v166, %v167
  %v169 = vsel %vm77, %v75, -inf
  %v170 = vmax.f32 %v168, %v169
  %v171 = vsel %vm77, %v46, -inf
  %v172 = vsel %vm77, %v48, -inf
  %v173 = vmax.f32 %v171, %v172
  %v174 = vsel %vm77, %v50, -inf
  %v175 = vmax.f32 %v173, %v174
  %v176 = vsel %vm77, %v52, -inf
  %v177 = vmax.f32 %v175, %v176
  %v178 = vsel %vm77, %v54, -inf
  %v179 = vmax.f32 %v177, %v178
  %v180 = vsel %vm77, %v56, -inf
  %v181 = vmax.f32 %v179, %v180
  %v182 = vsel %vm77, %v58, -inf
  %v183 = vmax.f32 %v181, %v182
  %v184 = vsel %vm77, %v60, -inf
  %v185 = vmax.f32 %v183, %v184
  %v186 = vsel %vm77, %v62, -inf
  %v187 = vmax.f32 %v185, %v186
  %v188 = vsel %vm77, %v64, -inf
  %v189 = vmax.f32 %v187, %v188
  %v190 = vsel %vm77, %v66, -inf
  %v191 = vmax.f32 %v189, %v190
  %v192 = vsel %vm77, %v68, -inf
  %v193 = vmax.f32 %v191, %v192
  %v194 = vsel %vm77, %v70, -inf
  %v195 = vmax.f32 %v193, %v194
  %v196 = vsel %vm77, %v72, -inf
  %v197 = vmax.f32 %v195, %v196
  %v198 = vsel %vm77, %v74, -inf
  %v199 = vmax.f32 %v197, %v198
  %v200 = vsel %vm77, %v76, -inf
  %v201 = vmax.f32 %v199, %v200
  %v202 = vsel %vm77, %v13, 0.0
  %v203 = vsel %vm77, %v15, 0.0
  %v204 = vadd.f32 %v202, %v203
  %v205 = vsel %vm77, %v17, 0.0
  %v206 = vadd.f32 %v204, %v205
  %v207 = vsel %vm77, %v19, 0.0
  %v208 = vadd.f32 %v206, %v207
  %v209 = vsel %vm77, %v21, 0.0
  %v210 = vadd.f32 %v208, %v209
  %v211 = vsel %vm77, %v23, 0.0
  %v212 = vadd.f32 %v210, %v211
  %v213 = vsel %vm77, %v25, 0.0
  %v214 = vadd.f32 %v212, %v213
  %v215 = vsel %vm77, %v27, 0.0
  %v216 = vadd.f32 %v214, %v215
  %v217 = vsel %vm77, %v29, 0.0
  %v218 = vadd.f32 %v216, %v217
  %v219 = vsel %vm77, %v31, 0.0
  %v220 = vadd.f32 %v218, %v219
  %v221 = vsel %vm77, %v33, 0.0
  %v222 = vadd.f32 %v220, %v221
  %v223 = vsel %vm77, %v35, 0.0
  %v224 = vadd.f32 %v222, %v223
  %v225 = vsel %vm77, %v37, 0.0
  %v226 = vadd.f32 %v224, %v225
  %v227 = vsel %vm77, %v39, 0.0
  %v228 = vadd.f32 %v226, %v227
  %v229 = vsel %vm77, %v41, 0.0
  %v230 = vadd.f32 %v228, %v229
  %v231 = vsel %vm77, %v43, 0.0
  %v232 = vadd.f32 %v230, %v231
  %v233 = vsel %vm77, %v14, 0.0
  %v234 = vsel %vm77, %v16, 0.0
  %v235 = vadd.f32 %v233, %v234
  %v236 = vsel %vm77, %v18, 0.0
  %v237 = vadd.f32 %v235, %v236
  %v238 = vsel %vm77, %v20, 0.0
  %v239 = vadd.f32 %v237, %v238
  %v240 = vsel %vm77, %v22, 0.0
  %v241 = vadd.f32 %v239, %v240
  %v242 = vsel %vm77, %v24, 0.0
  %v243 = vadd.f32 %v241, %v242
  %v244 = vsel %vm77, %v26, 0.0
  %v245 = vadd.f32 %v243, %v244
  %v246 = vsel %vm77, %v28, 0.0
  %v247 = vadd.f32 %v245, %v246
  %v248 = vsel %vm77, %v30, 0.0
  %v249 = vadd.f32 %v247, %v248
  %v250 = vsel %vm77, %v32, 0.0
  %v251 = vadd.f32 %v249, %v250
  %v252 = vsel %vm77, %v34, 0.0
  %v253 = vadd.f32 %v251, %v252
  %v254 = vsel %vm77, %v36, 0.0
  %v255 = vadd.f32 %v253, %v254
  %v256 = vsel %vm77, %v38, 0.0
  %v257 = vadd.f32 %v255, %v256
  %v258 = vsel %vm77, %v40, 0.0
  %v259 = vadd.f32 %v257, %v258
  %v260 = vsel %vm77, %v42, 0.0
  %v261 = vadd.f32 %v259, %v260
  %v262 = vsel %vm77, %v44, 0.0
  %v263 = vadd.f32 %v261, %v262
  %v264 = vsel %vm77, %v45, 0.0
  %v265 = vsel %vm77, %v47, 0.0
  %v266 = vadd.f32 %v264, %v265
  %v267 = vsel %vm77, %v49, 0.0
  %v268 = vadd.f32 %v266, %v267
  %v269 = vsel %vm77, %v51, 0.0
  %v270 = vadd.f32 %v268, %v269
  %v271 = vsel %vm77, %v53, 0.0
  %v272 = vadd.f32 %v270, %v271
  %v273 = vsel %vm77, %v55, 0.0
  %v274 = vadd.f32 %v272, %v273
  %v275 = vsel %vm77, %v57, 0.0
  %v276 = vadd.f32 %v274, %v275
  %v277 = vsel %vm77, %v59, 0.0
  %v278 = vadd.f32 %v276, %v277
  %v279 = vsel %vm77, %v61, 0.0
  %v280 = vadd.f32 %v278, %v279
  %v281 = vsel %vm77, %v63, 0.0
  %v282 = vadd.f32 %v280, %v281
  %v283 = vsel %vm77, %v65, 0.0
  %v284 = vadd.f32 %v282, %v283
  %v285 = vsel %vm77, %v67, 0.0
  %v286 = vadd.f32 %v284, %v285
  %v287 = vsel %vm77, %v69, 0.0
  %v288 = vadd.f32 %v286, %v287
  %v289 = vsel %vm77, %v71, 0.0
  %v290 = vadd.f32 %v288, %v289
  %v291 = vsel %vm77, %v73, 0.0
  %v292 = vadd.f32 %v290, %v291
  %v293 = vsel %vm77, %v75, 0.0
  %v294 = vadd.f32 %v292, %v293
  %v295 = vsel %vm77, %v46, 0.0
  %v296 = vsel %vm77, %v48, 0.0
  %v297 = vadd.f32 %v295, %v296
  %v298 = vsel %vm77, %v50, 0.0
  %v299 = vadd.f32 %v297, %v298
  %v300 = vsel %vm77, %v52, 0.0
  %v301 = vadd.f32 %v299, %v300
  %v302 = vsel %vm77, %v54, 0.0
  %v303 = vadd.f32 %v301, %v302
  %v304 = vsel %vm77, %v56, 0.0
  %v305 = vadd.f32 %v303, %v304
  %v306 = vsel %vm77, %v58, 0.0
  %v307 = vadd.f32 %v305, %v306
  %v308 = vsel %vm77, %v60, 0.0
  %v309 = vadd.f32 %v307, %v308
  %v310 = vsel %vm77, %v62, 0.0
  %v311 = vadd.f32 %v309, %v310
  %v312 = vsel %vm77, %v64, 0.0
  %v313 = vadd.f32 %v311, %v312
  %v314 = vsel %vm77, %v66, 0.0
  %v315 = vadd.f32 %v313, %v314
  %v316 = vsel %vm77, %v68, 0.0
  %v317 = vadd.f32 %v315, %v316
  %v318 = vsel %vm77, %v70, 0.0
  %v319 = vadd.f32 %v317, %v318
  %v320 = vsel %vm77, %v72, 0.0
  %v321 = vadd.f32 %v319, %v320
  %v322 = vsel %vm77, %v74, 0.0
  %v323 = vadd.f32 %v321, %v322
  %v324 = vsel %vm77, %v76, 0.0
  %v325 = vadd.f32 %v323, %v324
  %v326 = vmul.f32 %v232, 0.0625
  %v327 = vmul.f32 %v263, 0.0625
  %v328 = vmul.f32 %v294, 0.0625
  %v329 = vmul.f32 %v325, 0.0625
  %v330 = vsub.f32 %v108, %v326
  %v331 = vsub.f32 %v139, %v327
  %v332 = vsub.f32 %v170, %v328
  %v333 = vsub.f32 %v201, %v329
  %v334 = vstv %s12
  %v335 = vmul.f32 %v334, %v330
  %v336 = vmul.f32 %v334, %v331
  %v337 = vmul.f32 %v334, %v332
  %v338 = vmul.f32 %v334, %v333
  %v339 = vadd.f32 %v326, %v335
  %v340 = vadd.f32 %v327, %v336
  %v341 = vadd.f32 %v328, %v337
  %v342 = vadd.f32 %v329, %v338
  %343 = vst.msk [vmem:[%s2] sm:$0xff] %vm77, %v339
  %344 = vst.msk [vmem:[%s2 + $0x8] sm:$0xff] %vm77, %v340
  %345 = vst.msk [vmem:[%s2 + $0x10] sm:$0xff] %vm77, %v341
  %346 = vst.msk [vmem:[%s2 + $0x18] sm:$0xff] %vm77, %v342
  // Predicated region
  $region10: #{tpu_custom_call.1} parent=0 // pred_check
    _
  $region11: #{tpu_custom_call.1} parent=0 // pred_check_branch
    %348 = sbr.rel (0) target = $region13
  $region12: #{tpu_custom_call.1} parent=0 // pred_region
    _
  $region13: #{tpu_custom_call.1} parent=0 // pred_fallthru
    _
  // Predicated region
  $region14: #{tpu_custom_call.1} parent=0 // pred_check
    _
  $region15: #{tpu_custom_call.1} parent=0 // pred_check_branch
    %350 = sbr.rel (0) target = $region17
  $region16: #{tpu_custom_call.1} parent=0 // pred_region
    _
  $region17: #{tpu_custom_call.1} parent=0 // pred_fallthru
    _

</llo_original>
